<compile_context>
chip_gen: v7x
topology: tpu7x:2x2x1
jax: 0.10.0
libtpu: 0.0.40
codegen_flags: <defaults>
</compile_context>

<pallas_src>
import math

import jax
import jax.numpy as jnp
from jax import lax
from jax.experimental import pallas as pl
from jax.experimental.pallas import tpu as pltpu


_LANES = 128          # f32 lane width: keep the feature dim a multiple of 128
_DEFAULT_TM = 128     # rows per grid step. Raise to 512-1024 on v5e/v6e
                      # (128 MiB VMEM); keep ~128-256 on v7x (64 MiB VMEM).
_VMEM_LIMIT = 32 * 1024 * 1024   # explicit scoped-VMEM cap, safe on all gens


def _round_up(a: int, b: int) -> int:
    return (a + b - 1) // b * b


def _pad_axis(arr, axis, new_size, value=0):
    pad = new_size - arr.shape[axis]
    if pad == 0:
        return arr
    widths = [(0, 0)] * arr.ndim
    widths[axis] = (0, pad)
    return jnp.pad(arr, widths, constant_values=value)


def _flatten_features(x):
    """(N, ...) -> (N, D) row-major. Returns (x2d, trailing_shape)."""
    trailing = x.shape[1:]
    d = int(math.prod(trailing)) if trailing else 1
    return x.reshape(x.shape[0], d), trailing


def _dot_input_dtype(dtype):
    """Feed bf16/f32 to the MXU natively; everything else is upcast to f32."""
    dtype = jnp.dtype(dtype)
    if dtype in (jnp.dtype(jnp.bfloat16), jnp.dtype(jnp.float32)):
        return dtype
    return jnp.dtype(jnp.float32)


# ---------------------------------------------------------------------------
# In-kernel helper: gather `dst_ref.shape[0]` rows of x (left in HBM via
# memory_space=pl.ANY) selected by sel_ref[base : base + rows] into dst_ref.
# sel_ref lives in SMEM (scalar prefetch), so the scalar unit reads the index
# and feeds the DMA descriptor directly -- no (M,1) VMEM index tile.
# ---------------------------------------------------------------------------
def _gather_rows_into(sel_ref, base, x_hbm, dst_ref, copy_sem):
    rows = dst_ref.shape[0]

    @pl.loop(0, rows)
    def _start(r):
        pltpu.make_async_copy(
            x_hbm.at[sel_ref[base + r]], dst_ref.at[r], copy_sem).start()

    @pl.loop(0, rows)
    def _wait(r):
        # Same-shaped descriptor: waits for one row-copy's worth of bytes.
        pltpu.make_async_copy(x_hbm.at[0], dst_ref.at[r], copy_sem).wait()


# ---------------------------------------------------------------------------
# Selector: out[m, :] = x[idx[m], :]   (pure HBM-bandwidth-bound DMA gather)
# ---------------------------------------------------------------------------
def _selector_kernel(sel_ref, x_hbm, o_ref, copy_sem):
    t = pl.program_id(0)
    # Gather this step's TM rows directly into the pipelined output tile.
    _gather_rows_into(sel_ref, t * o_ref.shape[0], x_hbm, o_ref, copy_sem)


def selector_forward(x, idx, *, tm=_DEFAULT_TM):
    """Equivalent of easier.Selector(idx).forward(x) == x[idx]."""
    x2d, trailing = _flatten_features(x)
    n_rows, d = x2d.shape
    m = idx.shape[0]

    dp = _round_up(max(d, 1), _LANES)    # lane-dense output (no vst.msk)
    mp = _round_up(max(m, 1), tm)

    x_p = _pad_axis(x2d, 1, dp)
    sel = idx.astype(jnp.int32)
    sel = jnp.where(sel < 0, sel + n_rows, sel)     # torch-style negative idx
    sel = _pad_axis(sel, 0, mp, value=0)            # pad rows gather row 0

    out = pl.pallas_call(
        _selector_kernel,
        out_shape=jax.ShapeDtypeStruct((mp, dp), x.dtype),
        grid_spec=pltpu.PrefetchScalarGridSpec(
            num_scalar_prefetch=1,                  # sel -> SMEM
            grid=(mp // tm,),
            in_specs=[pl.BlockSpec(memory_space=pl.ANY)],   # x stays in HBM
            out_specs=pl.BlockSpec((tm, dp), lambda i, sel: (i, 0)),
            scratch_shapes=[pltpu.SemaphoreType.DMA(())],
        ),
        compiler_params=pltpu.CompilerParams(
            dimension_semantics=("parallel",),      # data-parallel row tiles
            vmem_limit_bytes=_VMEM_LIMIT),
    )(sel, x_p)
    return out[:m, :d].reshape((m,) + trailing)


# ---------------------------------------------------------------------------
# Reducer: out[j, :] = sum_{m : idx[m] == j} x[m, :]   (scatter-sum, n bins)
# One-hot is built directly in (n, TM) orientation -> no .T / XLU relayout.
# ---------------------------------------------------------------------------
def _reducer_kernel(red_ref, x_ref, o_ref, acc_ref):
    t = pl.program_id(0)
    n_bins = acc_ref.shape[0]
    tm = x_ref.shape[0]

    @pl.when(t == 0)
    def _():
        acc_ref[...] = jnp.zeros_like(acc_ref)

    dt = _dot_input_dtype(x_ref.dtype)
    # one_hot[j, m] = (idx[m] == j); out-of-range idx (incl. padding == n)
    # produces an all-zero column and contributes nothing.
    one_hot = (red_ref[...] ==
               lax.broadcasted_iota(jnp.int32, (n_bins, tm), 0)).astype(dt)
    acc_ref[...] += jnp.dot(one_hot, x_ref[...].astype(dt),
                            preferred_element_type=jnp.float32)

    @pl.when(t == pl.num_programs(0) - 1)
    def _():
        o_ref[...] = acc_ref[...].astype(o_ref.dtype)


def reducer_forward(x, idx, n, *, tm=_DEFAULT_TM):
    """Equivalent of easier.Reducer(idx, n, reduce='sum').forward(x)
    (the default out=None path: fresh zeros + scatter 'sum',
    include_self=False)."""
    # TODO(synk): the optional `out=` accumulation buffer and non-'sum'
    # ReduceOps ('prod'/'mean'/'amax'/'amin') of Reducer.forward are not
    # implemented; only the default sum-into-zeros path is.
    x2d, trailing = _flatten_features(x)
    m, d = x2d.shape
    dp = _round_up(max(d, 1), _LANES)
    mp = _round_up(max(m, 1), tm)

    x_p = _pad_axis(_pad_axis(x2d, 1, dp), 0, mp)
    red = _pad_axis(idx.astype(jnp.int32), 0, mp, value=n)  # n -> dropped
    red = red.reshape(1, mp)

    out = pl.pallas_call(
        _reducer_kernel,
        out_shape=jax.ShapeDtypeStruct((n, dp), x.dtype),
        grid_spec=pltpu.PrefetchScalarGridSpec(
            num_scalar_prefetch=0,
            grid=(mp // tm,),                       # reduction over M tiles
            in_specs=[pl.BlockSpec((1, tm), lambda i: (0, i)),
                      pl.BlockSpec((tm, dp), lambda i: (i, 0))],
            out_specs=pl.BlockSpec((n, dp), lambda i: (0, 0)),
            scratch_shapes=[pltpu.VMEM((n, dp), jnp.float32)],
        ),
        compiler_params=pltpu.CompilerParams(
            dimension_semantics=("arbitrary",),     # M is a reduction axis
            vmem_limit_bytes=_VMEM_LIMIT),
    )(red, x_p)
    return out[:, :d].reshape((n,) + trailing)


# ---------------------------------------------------------------------------
# Fused Selector -> Reducer: out[red_idx[m], :] += x[sel_idx[m], :]
# Single pallas_call; the gathered (M, D) intermediate never touches HBM.
# ---------------------------------------------------------------------------
def _select_reduce_kernel(sel_ref, red_ref, x_hbm, o_ref, xbuf, copy_sem,
                          acc_ref):
    t = pl.program_id(0)
    tm = xbuf.shape[0]
    n_bins = acc_ref.shape[0]

    @pl.when(t == 0)
    def _():
        acc_ref[...] = jnp.zeros_like(acc_ref)

    # 1) DMA-gather this tile's rows x[sel_idx[t*tm + r]] into VMEM.
    _gather_rows_into(sel_ref, t * tm, x_hbm, xbuf, copy_sem)

    # 2) Scatter-sum the tile into the n bins on the MXU (transpose-free).
    dt = _dot_input_dtype(xbuf.dtype)
    one_hot = (red_ref[...] ==
               lax.broadcasted_iota(jnp.int32, (n_bins, tm), 0)).astype(dt)
    acc_ref[...] += jnp.dot(one_hot, xbuf[...].astype(dt),
                            preferred_element_type=jnp.float32)

    @pl.when(t == pl.num_programs(0) - 1)
    def _():
        o_ref[...] = acc_ref[...].astype(o_ref.dtype)


def select_reduce_forward(x, sel_idx, red_idx, n, *, tm=_DEFAULT_TM):
    """Fused Selector(sel_idx) followed by Reducer(red_idx, n, 'sum')."""
    # TODO(synk): very large `n` would additionally need tiling of the bin
    # axis (the (n, Dp) accumulator and (n, TM) one-hot must fit VMEM).
    x2d, trailing = _flatten_features(x)
    n_rows, d = x2d.shape
    m = sel_idx.shape[0]
    dp = _round_up(max(d, 1), _LANES)
    mp = _round_up(max(m, 1), tm)

    x_p = _pad_axis(x2d, 1, dp)
    sel = sel_idx.astype(jnp.int32)
    sel = jnp.where(sel < 0, sel + n_rows, sel)     # torch-style negative idx
    sel = _pad_axis(sel, 0, mp, value=0)            # padded rows gather row 0
    red = _pad_axis(red_idx.astype(jnp.int32), 0, mp, value=n)  # -> dropped
    red = red.reshape(1, mp)

    out = pl.pallas_call(
        _select_reduce_kernel,
        out_shape=jax.ShapeDtypeStruct((n, dp), x.dtype),
        grid_spec=pltpu.PrefetchScalarGridSpec(
            num_scalar_prefetch=1,                  # sel -> SMEM addressing
            grid=(mp // tm,),                       # reduction over M tiles
            in_specs=[pl.BlockSpec((1, tm), lambda i, sel: (0, i)),
                      pl.BlockSpec(memory_space=pl.ANY)],   # x stays in HBM
            out_specs=pl.BlockSpec((n, dp), lambda i, sel: (0, 0)),
            scratch_shapes=[pltpu.VMEM((tm, dp), x_p.dtype),     # gather tile
                            pltpu.SemaphoreType.DMA(()),
                            pltpu.VMEM((n, dp), jnp.float32)],   # accumulator
        ),
        compiler_params=pltpu.CompilerParams(
            dimension_semantics=("arbitrary",),
            vmem_limit_bytes=_VMEM_LIMIT),
    )(sel, red, x_p)
    return out[:, :d].reshape((n,) + trailing)


# ---------------------------------------------------------------------------
# Module wrapper. easier.Module.forward() is `pass`; the meaningful runtime
# pattern of a typical EASIER module is select -> reduce, exposed (and fused)
# here.  Distributed collect()/save()/halo-exchange paths are out of scope.
# ---------------------------------------------------------------------------
class EasierModule:
    def __init__(self, sel_idx, red_idx, n):
        self.sel_idx = sel_idx
        self.red_idx = red_idx
        self.n = n

    def select(self, x):                     # Selector.forward
        return selector_forward(x, self.sel_idx)

    def reduce(self, x):                     # Reducer.forward
        return reducer_forward(x, self.red_idx, self.n)

    def forward(self, x):
        # Fused path: no (M, D) HBM round trip between select and reduce.
        return select_reduce_forward(x, self.sel_idx, self.red_idx, self.n)


if __name__ == "__main__":
    key = jax.random.PRNGKey(0)
    k_x, k_sel, k_red = jax.random.split(key, 3)

    N, D = 128, 32     # element table: 128 elements, 32-wide feature vectors
    M = 320            # selected (edge) rows  -> padded to 384 internally
    n_bins = 48        # Reducer.n

    x = jax.random.normal(k_x, (N, D), dtype=jnp.float32)
    sel_idx = jax.random.randint(k_sel, (M,), 0, N, dtype=jnp.int32)
    red_idx = jax.random.randint(k_red, (M,), 0, n_bins, dtype=jnp.int32)

    mod = EasierModule(sel_idx, red_idx, n_bins)

    # standalone submodule forwards
    y_sel = jax.block_until_ready(mod.select(x))
    y_red = jax.block_until_ready(mod.reduce(y_sel))
    # fused module forward
    y_fused = jax.block_until_ready(mod.forward(x))

    # pure-JAX references
    sel_ref = x[sel_idx]
    red_ref = jnp.zeros((n_bins, D), jnp.float32).at[red_idx].add(sel_ref)

    assert y_sel.shape == (M, D) and y_sel.dtype == x.dtype
    assert y_red.shape == (n_bins, D) and y_fused.shape == (n_bins, D)
    assert jnp.allclose(y_sel, sel_ref, atol=1e-5, rtol=1e-5)
    assert jnp.allclose(y_red, red_ref, atol=1e-5, rtol=1e-5)
    assert jnp.allclose(y_fused, red_ref, atol=1e-5, rtol=1e-5)

    print("KERNEL_OK")
</pallas_src>

<mosaic_0001>
module attributes {stable_mosaic.version = 11 : i64} {
  func.func @_selector_kernel(%arg0: i32, %arg1: memref<384xi32, #tpu.memory_space<smem>>, %arg2: memref<128x128xf32, #tpu.memory_space<any>>, %arg3: memref<128x128xf32, #tpu.memory_space<vmem>>, %arg4: memref<!tpu.dma_semaphore, #tpu.memory_space<semaphore_mem>>) attributes {dimension_semantics = [#tpu.dimension_semantics<parallel>], iteration_bounds = array<i64: 3>, scalar_prefetch = 1 : i64, scratch_operands = 1 : i64, tpu.core_type = #tpu.core_type<tc>, window_params = [{}, {transform_indices = @transform_1, window_bounds = array<i64: 128, 128>}]} {
    %c128_i32 = arith.constant 128 : i32
    %0 = arith.muli %arg0, %c128_i32 : i32
    %c0_i32 = arith.constant 0 : i32
    %c128_i32_0 = arith.constant 128 : i32
    %1 = arith.addi %c0_i32, %c128_i32_0 : i32
    %c1_i32 = arith.constant 1 : i32
    scf.for %arg5 = %c0_i32 to %1 step %c1_i32  : i32 {
      %c1_i32_6 = arith.constant 1 : i32
      %3 = arith.muli %arg5, %c1_i32_6 : i32
      %c0_i32_7 = arith.constant 0 : i32
      %4 = arith.addi %c0_i32_7, %3 : i32
      %5 = arith.addi %0, %4 : i32
      %6 = arith.index_cast %5 : i32 to index
      %7 = memref.load %arg1[%6] : memref<384xi32, #tpu.memory_space<smem>>
      %c0_i32_8 = arith.constant 0 : i32
      %8 = tpu.memref_slice %arg2[%7, %c0_i32_8] : memref<128x128xf32, #tpu.memory_space<any>> -> memref<1x128xf32, #tpu.memory_space<any>>
      %9 = tpu.memref_squeeze %8 : memref<1x128xf32, #tpu.memory_space<any>> -> memref<128xf32, #tpu.memory_space<any>>
      %c0_i32_9 = arith.constant 0 : i32
      %10 = tpu.memref_slice %arg3[%4, %c0_i32_9] : memref<128x128xf32, #tpu.memory_space<vmem>> -> memref<1x128xf32, #tpu.memory_space<vmem>>
      %11 = tpu.memref_squeeze %10 : memref<1x128xf32, #tpu.memory_space<vmem>> -> memref<128xf32, #tpu.memory_space<vmem>>
      tpu.enqueue_dma source(%9 : memref<128xf32, #tpu.memory_space<any>>) target(%11 : memref<128xf32, #tpu.memory_space<vmem>>) target_semaphore(%arg4 : memref<!tpu.dma_semaphore, #tpu.memory_space<semaphore_mem>>)
    }
    %c128_i32_1 = arith.constant 128 : i32
    %c0_i32_2 = arith.constant 0 : i32
    %c128_i32_3 = arith.constant 128 : i32
    %2 = arith.addi %c0_i32_2, %c128_i32_3 : i32
    %c1_i32_4 = arith.constant 1 : i32
    scf.for %arg5 = %c0_i32_2 to %2 step %c1_i32_4  : i32 {
      %c1_i32_6 = arith.constant 1 : i32
      %3 = arith.muli %arg5, %c1_i32_6 : i32
      %c0_i32_7 = arith.constant 0 : i32
      %4 = arith.addi %c0_i32_7, %3 : i32
      %c0_i32_8 = arith.constant 0 : i32
      %c0_i32_9 = arith.constant 0 : i32
      %5 = tpu.memref_slice %arg2[%c0_i32_8, %c0_i32_9] : memref<128x128xf32, #tpu.memory_space<any>> -> memref<1x128xf32, #tpu.memory_space<any>>
      %6 = tpu.memref_squeeze %5 : memref<1x128xf32, #tpu.memory_space<any>> -> memref<128xf32, #tpu.memory_space<any>>
      %c0_i32_10 = arith.constant 0 : i32
      %7 = tpu.memref_slice %arg3[%4, %c0_i32_10] : memref<128x128xf32, #tpu.memory_space<vmem>> -> memref<1x128xf32, #tpu.memory_space<vmem>>
      %8 = tpu.memref_squeeze %7 : memref<1x128xf32, #tpu.memory_space<vmem>> -> memref<128xf32, #tpu.memory_space<vmem>>
      tpu.wait_dma2 semaphore(%arg4 : memref<!tpu.dma_semaphore, #tpu.memory_space<semaphore_mem>>) src(%6 : memref<128xf32, #tpu.memory_space<any>>) dst(%8 : memref<128xf32, #tpu.memory_space<vmem>>)
    }
    %c128_i32_5 = arith.constant 128 : i32
    return
  }
  func.func @transform_1(%arg0: i32, %arg1: memref<384xi32, #tpu.memory_space<smem>>) -> (i32, i32) {
    %c0_i32 = arith.constant 0 : i32
    %c0_i32_0 = arith.constant 0 : i32
    return %arg0, %c0_i32 : i32, i32
  }
}

</mosaic_0001>

<llo_original>
// kernel: tpu_custom_call.1
$region0: #{tpu_custom_call.1}
  #allocation0 [shape = 'u32[]', space=smem, size = 0x4, offset = 0x4, fixed_abs, tag = 'smem constant byte address 0x4 - core index']
  #allocation1 [shape = 'u32[144,128]{1,0:T(1,128)}', space=vmem, size = 0x12000, scoped, tag = 'internal scratch']
  #allocation2 [shape = 's32[1]{0}', space=sflag, size = 0x4, scoped, tag = 'scratch operand']
  #allocation3 [shape = 's32[1]{0}', space=sflag, size = 0x4, scoped, tag = 'scoped memory for tpu_custom_call.1']
  #allocation4 [shape = 'u8[1536]{0}', space=smem, size = 0x600, scoped, tag = 'prefetched SMEM operand 0']
  #allocation7 [shape = 's32[]', space=sflag, size = 0x4, offset = 0, fixed_abs, tag = 'sflag constant byte address 0x0 - dummy sync flag']
  #allocation8 [shape = 's32[]', space=sflag, size = 0x4, offset = 0, fixed_abs, tag = 'sflag constant byte address 0x0 - dummy sync flag']
  #allocation9 [shape = 'u32[]', space=smem, size = 0x4, offset = 0x44, fixed_abs, tag = 'smem constant byte address 0x44 - assertion arg 0']
  #allocation10 [shape = 'u32[]', space=smem, size = 0x4, offset = 0x48, fixed_abs, tag = 'smem constant byte address 0x48 - assertion arg 1']
  %s0 = inlined_call_operand.hbm [shape: s32[384], index: 0, kind: input, shape index: {}]
  %s1 = inlined_call_operand.hbm [shape: f32[128,128], index: 1, kind: input, shape index: {}]
  %s2 = inlined_call_operand.hbm [shape: f32[384,128], index: 2, kind: output, shape index: {}]
  %s3 = sld [smem:[#allocation0]]
  $region43: #{tpu_custom_call.1} parent=0
    _
  %s5 = ssub.s32 1, %s3
  %s6 = scalar_select 0, %s5, %s3
  %8 = dma.hbm_to_smem %s0, 48, [#allocation4], [#allocation3]
  %9 = dma.done [#allocation3], 48
  %10 = sfence
  $region1: #{tpu_custom_call.1} parent=0
    #allocation5 [shape = 'u8[131072]{0}', space=vmem, size = 0x20000, scoped, tag = 'output window, operand 0']
    #allocation6 [shape = 's32[2]{0}', space=sflag, size = 0x8, scoped, tag = 'scoped memory for tpu_custom_call.1']
    %11 = vsyncpa [#allocation6], 0
    %s12 = scalar_lea.sflag [#allocation6], 1
    %13 = vsyncpa %s12, 0
    loop: start=0, step=1, limit=4
    $region2: #{tpu_custom_call.1} parent=1 // loop_pre_header
      _
    $region3: #{tpu_custom_call.1} parent=1 // loop_header
      %s15 = sphi 0, %s19
      %p16 = scmp.ge.s32.totalorder %s15, 4
      %s24 = sphi 0, %s26
      %s27 = sphi 0, %s24
      %s37 = sphi 0, %s27
    $region4: #{tpu_custom_call.1} parent=1 // loop_header_branch
      %18 = sbr.rel (%p16) target = $region8
    $region5: #{tpu_custom_call.1} parent=1 // loop_body
      %s20 = ssub.s32 %s15, 1
      %s21 = sadd.s32 %s15, 1
      %s22 = ssub.s32 %s15, %s21
      %p23 = scmp.eq.s32.totalorder %s22, 0
      %s25 = sadd.s32 %s24, 1
      %s26 = scalar_select %p23, %s24, %s25
      %p28 = pneg %p23
      %p29 = scmp.eq.s32.totalorder %s15, 2
      %p30 = por %p28, %p29
      %p31 = scmp.ne.s32.totalorder %s24, %s27
      %p32 = scmp.eq.s32.totalorder %s15, 0
      %p33 = por %p31, %p32
      %p34 = scmp.ne.s32.totalorder %s24, %s27
      %p35 = scmp.eq.s32.totalorder %s20, 2
      %p36 = por %p34, %p35
      %p38 = scmp.ne.s32.totalorder %s27, %s37
      %p39 = scmp.eq.s32.totalorder %s20, 0
      %p40 = por %p38, %p39
      %p41 = scmp.lt.s32.totalorder %s15, 3
      // Predicated region
      $region9: #{tpu_custom_call.1} parent=5 // pred_check
        %p42 = pneg %p41
      $region10: #{tpu_custom_call.1} parent=5 // pred_check_branch
        %44 = sbr.rel (%p42) target = $region12
      $region11: #{tpu_custom_call.1} parent=5 // pred_region
        %p45 = pneg %p33
        %p46 = pneg %p30
        %s47 = sand.u32 %s24, 1
        %s48 = scalar_lea.sflag [#allocation6], %s47
        %s49 = sand.u32 %s24, 1
        %s50 = smul.addr %s49, 128
        %s51 = scalar_lea.vmem [#allocation5], %s50
        %s52 = smul.u32 16, %s15
        %s53 = smul.u32 %s15, 128
        loop: start=0, step=1, limit=128
        $region13: #{tpu_custom_call.1} parent=11 // loop_pre_header
          _
        $region14: #{tpu_custom_call.1} parent=11 // loop_header
          %s55 = sphi 0, %s59
          %p56 = scmp.ge.s32.totalorder %s55, 128
        $region15: #{tpu_custom_call.1} parent=11 // loop_header_branch
          %58 = sbr.rel (%p56) target = $region19
        $region16: #{tpu_custom_call.1} parent=11 // loop_body
          %s60 = sadd.s32 %s53, %s55
          %s61 = sld [smem:[#allocation4 + %s60]]
          %s62 = smul.addr %s61, 16
          %s63 = scalar_lea.hbm %s1, %s62
          %s64 = scalar_lea.vmem %s51, %s55 [#allocation5]
          // Predicated region
          $region20: #{tpu_custom_call.1} parent=16 // pred_check
            _
          $region21: #{tpu_custom_call.1} parent=16 // pred_check_branch
            %66 = sbr.rel target = $region23
          $region22: #{tpu_custom_call.1} parent=16 // pred_region
            %67 = sst [smem:[#allocation9]] [#allocation8]
            %68 = sst [smem:[#allocation10]] [#allocation7]
          $region23: #{tpu_custom_call.1} parent=16 // pred_fallthru
            _
          %70 = shalt.err (0)
          %s72 = sshll.u32 %s64, 4
          %s73 = int_to_ptr.vmem [resolvable:$true] %s72
          %75 = dma.hbm_to_vmem [thread:$0]  %s63, 16, %s73, [#allocation2]
        $region17: #{tpu_custom_call.1} parent=11 // loop_footer
          %s59 = sadd.s32 1, %s55
        $region18: #{tpu_custom_call.1} parent=11 // loop_footer_branch
          %54 = sbr.rel target = $region14
        $region19: #{tpu_custom_call.1} parent=11 // loop_exit
          _
        loop: start=0, step=1, limit=128
        $region24: #{tpu_custom_call.1} parent=11 // loop_pre_header
          _
        $region25: #{tpu_custom_call.1} parent=11 // loop_header
          %s77 = sphi 0, %s81
          %p78 = scmp.ge.s32.totalorder %s77, 128
        $region26: #{tpu_custom_call.1} parent=11 // loop_header_branch
          %80 = sbr.rel (%p78) target = $region30
        $region27: #{tpu_custom_call.1} parent=11 // loop_body
          %83 = dma.done [#allocation2], 16
        $region28: #{tpu_custom_call.1} parent=11 // loop_footer
          %s81 = sadd.s32 1, %s77
        $region29: #{tpu_custom_call.1} parent=11 // loop_footer_branch
          %76 = sbr.rel target = $region25
        $region30: #{tpu_custom_call.1} parent=11 // loop_exit
          _
        %s84 = sand.u32 %s24, 1
        %s85 = scalar_lea.sflag [#allocation6], %s84
        %s86 = sand.u32 %s24, 1
        %s87 = smul.addr %s86, 128
        %s88 = scalar_lea.vmem [#allocation5], %s87
        // Predicated region
        $region31: #{tpu_custom_call.1} parent=11 // pred_check
          %p89 = pneg %p30
        $region32: #{tpu_custom_call.1} parent=11 // pred_check_branch
          %91 = sbr.rel (%p89) target = $region34
        $region33: #{tpu_custom_call.1} parent=11 // pred_region
          %s92 = smul.u32 16, %s15
          %s94 = ssub.s32 2048, 2048
          %95 = vsyncadd %s85, %s94
          %s96 = smul.addr %s92, 128
          %s97 = scalar_lea.hbm %s2, %s96
          %s98 = sshll.u32 %s88, 4
          %s99 = int_to_ptr.vmem [resolvable:$true] %s98
          %104 = dma.vmem_to_hbm [thread:$0]  %s99, 2048, %s97, %s85, 128, 128, 8
        $region34: #{tpu_custom_call.1} parent=11 // pred_fallthru
          _
      $region12: #{tpu_custom_call.1} parent=5 // pred_fallthru
        _
      %p105 = scmp.le.s32.totalorder 1, %s15
      // Predicated region
      $region35: #{tpu_custom_call.1} parent=5 // pred_check
        %p106 = pneg %p105
      $region36: #{tpu_custom_call.1} parent=5 // pred_check_branch
        %108 = sbr.rel (%p106) target = $region38
      $region37: #{tpu_custom_call.1} parent=5 // pred_region
        %s109 = ssub.s32 %s15, 1
        // Predicated region
        $region39: #{tpu_custom_call.1} parent=37 // pred_check
          %p110 = pneg %p36
        $region40: #{tpu_custom_call.1} parent=37 // pred_check_branch
          %112 = sbr.rel (%p110) target = $region42
        $region41: #{tpu_custom_call.1} parent=37 // pred_region
          %s113 = sand.u32 %s27, 1
          %s114 = scalar_lea.sflag [#allocation6], %s113
          %s115 = sand.u32 %s27, 1
          %s116 = smul.addr %s115, 128
          %s117 = scalar_lea.vmem [#allocation5], %s116
          %118 = dma.done %s114, 2048
        $region42: #{tpu_custom_call.1} parent=37 // pred_fallthru
          _
      $region38: #{tpu_custom_call.1} parent=5 // pred_fallthru
        _
    $region6: #{tpu_custom_call.1} parent=1 // loop_footer
      %s19 = sadd.s32 1, %s15
    $region7: #{tpu_custom_call.1} parent=1 // loop_footer_branch
      %14 = sbr.rel target = $region3
    $region8: #{tpu_custom_call.1} parent=1 // loop_exit
      _
    %119 = vsyncpa [#allocation6], 1
    %s120 = scalar_lea.sflag [#allocation6], 1
    %121 = vsyncpa %s120, 1
  %122 = vsyncmov [#allocation2]
  %s123 = vpop.sfrf %122
  %p124 = scmp.eq.s32.totalorder %s123, 0
  %p125 = pneg %p124
  %127 = shalt.err (%p125)

</llo_original>
